<compile_context>
chip_gen: v5e
topology: v5e:2x2
jax: 0.10.0
libtpu: 0.0.40
codegen_flags: <defaults>
</compile_context>

<pallas_src>
import jax
import jax.numpy as jnp
from jax.experimental import pallas as pl
from jax.experimental.pallas import tpu as pltpu

_LANES = 128      # vreg lane width
_SUBLANES = 8     # vreg sublane count (f32)


def _round_up(a, m):
    return -(-a // m) * m


def _linreg_kernel(w_ref, b_ref, x_ref, o_ref):
    # w_ref / b_ref: f32 SMEM scalars, shape (1,).
    # x_ref / o_ref: lane-dense (tb, 128) VMEM tiles.
    w = w_ref[0]
    b = b_ref[0]
    # FMA in f32 (no-op cast for f32 inputs), store in the output dtype.
    o_ref[...] = (x_ref[...].astype(jnp.float32) * w + b).astype(o_ref.dtype)


def _choose_tiles(rows, block_rows):
    """Pick (tile_rows, num_tiles) for a (rows, 128) slab."""
    if rows <= _SUBLANES:
        # Tiny slab: one block equal to the full array dims (always legal).
        return rows, 1
    nt = pl.cdiv(rows, block_rows)
    if nt < 2:
        nt = 2            # >=2 grid steps so v7x megacore uses both TCs
    elif nt % 2:
        nt += 1           # even tile count -> balanced split across 2 TCs
    tb = _round_up(pl.cdiv(rows, nt), _SUBLANES)
    return tb, pl.cdiv(rows, tb)


def linear_forward(x, weight, bias, *, block_rows=2048):
    """Forward of nn.Linear(1, 1): out = x * w + b.

    x: (N, 1); weight: (1, 1); bias: (1,)  ->  (N, 1)
    """
    n, in_f = x.shape
    out_f = weight.shape[0]
    assert in_f == 1 and out_f == 1, "kernel specialized for Linear(1, 1)"
    dt = x.dtype

    # f32 SMEM scalars (keeps the FMA in f32 even if x is bf16).
    w_s = jnp.ravel(weight).astype(jnp.float32)
    b_s = jnp.ravel(bias).astype(jnp.float32)

    x_flat = x.reshape(n)                     # (N, 1) -> (N,), metadata only
    bulk = (n // _LANES) * _LANES             # aligned bulk handled in Pallas
    tail = n - bulk                           # < 128 elements, plain JAX

    pieces = []

    if bulk:
        rows = bulk // _LANES
        x_bulk = x_flat if tail == 0 else jax.lax.slice_in_dim(x_flat, 0, bulk)
        x_slab = x_bulk.reshape(rows, _LANES)  # row-major lane-dense view
        tb, num_tiles = _choose_tiles(rows, block_rows)

        out_slab = pl.pallas_call(
            _linreg_kernel,
            out_shape=jax.ShapeDtypeStruct((rows, _LANES), dt),
            grid=(num_tiles,),
            in_specs=[
                pl.BlockSpec(memory_space=pltpu.MemorySpace.SMEM),  # weight
                pl.BlockSpec(memory_space=pltpu.MemorySpace.SMEM),  # bias
                pl.BlockSpec((tb, _LANES), lambda i: (i, 0)),       # x tile
            ],
            out_specs=pl.BlockSpec((tb, _LANES), lambda i: (i, 0)),
            compiler_params=pltpu.CompilerParams(
                dimension_semantics=("parallel",)),  # megacore-shardable
        )(w_s, b_s, x_slab)

        pieces.append(out_slab.reshape(bulk))

    if tail:
        # Ragged remainder (< 128 elems): one tiny fused VPU op in plain JAX.
        x_tail = jax.lax.slice_in_dim(x_flat, bulk, n)
        pieces.append(
            (x_tail.astype(jnp.float32) * w_s[0] + b_s[0]).astype(dt))

    out_flat = pieces[0] if len(pieces) == 1 else jnp.concatenate(pieces)
    return out_flat.reshape(n, out_f)


if __name__ == "__main__":
    input_dim = 1
    output_dim = 1

    key = jax.random.PRNGKey(0)
    kx, kw, kb = jax.random.split(key, 3)

    # Deterministic init matching nn.Linear's U(-1/sqrt(in), 1/sqrt(in)).
    bound = 1.0 / jnp.sqrt(jnp.float32(input_dim))
    weight = jax.random.uniform(kw, (output_dim, input_dim),
                                minval=-bound, maxval=bound, dtype=jnp.float32)
    bias = jax.random.uniform(kb, (output_dim,),
                              minval=-bound, maxval=bound, dtype=jnp.float32)

    fwd = jax.jit(linear_forward)

    # batch=1024: aligned fast path (zero extra copies, kernel only).
    # batch=300 : bulk of 256 through the kernel + 44-elem tail in JAX.
    # batch=8   : pure-tail path (below one lane-dense row).
    for batch in (1024, 300, 8):
        x = jax.random.normal(kx, (batch, input_dim), dtype=jnp.float32)
        out = jax.block_until_ready(fwd(x, weight, bias))

        ref = x @ weight.T + bias           # plain-JAX nn.Linear reference
        assert out.shape == (batch, output_dim)
        assert jnp.allclose(out, ref, atol=1e-5, rtol=1e-5), batch

    print("KERNEL_OK")
</pallas_src>

<mosaic_0001>
module attributes {stable_mosaic.version = 11 : i64} {
  func.func @_linreg_kernel(%arg0: i32, %arg1: memref<1xf32, #tpu.memory_space<smem>>, %arg2: memref<1xf32, #tpu.memory_space<smem>>, %arg3: memref<8x128xf32, #tpu.memory_space<vmem>>, %arg4: memref<8x128xf32, #tpu.memory_space<vmem>>) attributes {dimension_semantics = [#tpu.dimension_semantics<parallel>], iteration_bounds = array<i64: 1>, scalar_prefetch = 0 : i64, scratch_operands = 0 : i64, tpu.core_type = #tpu.core_type<tc>, window_params = [{transform_indices = @transform_0, window_bounds = array<i64: 1>}, {transform_indices = @transform_1, window_bounds = array<i64: 1>}, {transform_indices = @transform_2, window_bounds = array<i64: 8, 128>}, {transform_indices = @transform_3, window_bounds = array<i64: 8, 128>}]} {
    %c0 = arith.constant 0 : index
    %0 = memref.load %arg1[%c0] : memref<1xf32, #tpu.memory_space<smem>>
    %c0_0 = arith.constant 0 : index
    %1 = memref.load %arg2[%c0_0] : memref<1xf32, #tpu.memory_space<smem>>
    %c0_1 = arith.constant 0 : index
    %c0_2 = arith.constant 0 : index
    %2 = vector.load %arg3[%c0_1, %c0_2] : memref<8x128xf32, #tpu.memory_space<vmem>>, vector<8x128xf32>
    %3 = vector.broadcast %0 : f32 to vector<8x128xf32>
    %4 = arith.mulf %2, %3 : vector<8x128xf32>
    %5 = vector.broadcast %1 : f32 to vector<8x128xf32>
    %6 = arith.addf %4, %5 : vector<8x128xf32>
    %c0_3 = arith.constant 0 : index
    %c0_4 = arith.constant 0 : index
    %7 = vector.load %arg4[%c0_3, %c0_4] : memref<8x128xf32, #tpu.memory_space<vmem>>, vector<8x128xf32>
    tpu.vector_store %arg4[%c0_3, %c0_4], %6 {strides = array<i32>} : memref<8x128xf32, #tpu.memory_space<vmem>>, vector<8x128xf32>,
    return
  }
  func.func @transform_0(%arg0: i32) -> i32 {
    %c0_i32 = arith.constant 0 : i32
    %c0_i32_0 = arith.constant 0 : i32
    return %c0_i32 : i32
  }
  func.func @transform_1(%arg0: i32) -> i32 {
    %c0_i32 = arith.constant 0 : i32
    %c0_i32_0 = arith.constant 0 : i32
    return %c0_i32 : i32
  }
  func.func @transform_2(%arg0: i32) -> (i32, i32) {
    %c0_i32 = arith.constant 0 : i32
    %c0_i32_0 = arith.constant 0 : i32
    return %arg0, %c0_i32 : i32, i32
  }
  func.func @transform_3(%arg0: i32) -> (i32, i32) {
    %c0_i32 = arith.constant 0 : i32
    %c0_i32_0 = arith.constant 0 : i32
    return %arg0, %c0_i32 : i32, i32
  }
}

</mosaic_0001>

<llo_original>
// kernel: linear_forward.1
$region0: #{linear_forward.1}
  #allocation0 [shape = 'u32[]', space=smem, size = 0x4, offset = 0x4, fixed_abs, tag = 'smem constant byte address 0x4 - core index']
  #allocation1 [shape = 'u32[72,128]{1,0:T(1,128)}', space=vmem, size = 0x9000, scoped, tag = 'internal scratch']
  #allocation2 [shape = 'f32[1]{0:T(128)S(6)}', space=smem, size = 0x200, scoped, tag = 'scoped memory for linear_forward.1']
  #allocation3 [shape = 'f32[1]{0:T(128)S(6)}', space=smem, size = 0x200, scoped, tag = 'scoped memory for linear_forward.1']
  %s0 = inlined_call_operand.<no memory space> [shape: f32[1], index: 0, kind: input, shape index: {}]
  %s1 = inlined_call_operand.<no memory space> [shape: f32[1], index: 1, kind: input, shape index: {}]
  %s2 = inlined_call_operand.hbm [shape: f32[8,128], index: 2, kind: input, shape index: {}]
  %s3 = inlined_call_operand.hbm [shape: f32[8,128], index: 3, kind: output, shape index: {}]
  %s4 = sld [smem:[#allocation0]]
  $region26: #{linear_forward.1} parent=0
    _
  %s6 = ssub.s32 1, %s4
  %s7 = scalar_select 0, %s6, %s4
  %8 = sst [smem:[#allocation2]] %s0
  %9 = sst [smem:[#allocation3]] %s1
  $region1: #{linear_forward.1} parent=0
    #allocation4 [shape = 'u8[4096]{0}', space=vmem, size = 0x1000, scoped, tag = 'input window, operand 2, single buffered']
    #allocation5 [shape = 's32[1]{0}', space=sflag, size = 0x4, scoped, tag = 'scoped memory for linear_forward.1']
    #allocation6 [shape = 's32[1]{0}', space=sflag, size = 0x4, scoped, tag = 'scoped memory for linear_forward.1']
    #allocation7 [shape = 'u8[4096]{0}', space=vmem, size = 0x1000, scoped, tag = 'output window, operand 0, single buffered']
    %10 = vsyncpa [#allocation5], 0
    %11 = vsyncpa [#allocation6], 0
    // Predicated region
    $region2: #{linear_forward.1} parent=1 // pred_check
      _
    $region3: #{linear_forward.1} parent=1 // pred_check_branch
      %13 = sbr.rel (0) target = $region5
    $region4: #{linear_forward.1} parent=1 // pred_region
      _
    $region5: #{linear_forward.1} parent=1 // pred_fallthru
      _
    // Predicated region
    $region6: #{linear_forward.1} parent=1 // pred_check
      _
    $region7: #{linear_forward.1} parent=1 // pred_check_branch
      %15 = sbr.rel (0) target = $region9
    $region8: #{linear_forward.1} parent=1 // pred_region
      _
    $region9: #{linear_forward.1} parent=1 // pred_fallthru
      _
    // Predicated region
    $region10: #{linear_forward.1} parent=1 // pred_check
      _
    $region11: #{linear_forward.1} parent=1 // pred_check_branch
      %17 = sbr.rel (0) target = $region13
    $region12: #{linear_forward.1} parent=1 // pred_region
      %19 = vsyncadd [#allocation5], 0
      %s21 = sshll.u32 %s2, 4
      %s22 = int_to_ptr.hbm [resolvable:$true] %s21
      %s23 = sshll.u32 [#allocation4], 4
      %s24 = int_to_ptr.vmem [resolvable:$true] %s23
      %26 = dma.hbm_to_vmem [thread:$0]  %s22, 128, %s24, [#allocation5]
    $region13: #{linear_forward.1} parent=1 // pred_fallthru
      _
    // Predicated region
    $region14: #{linear_forward.1} parent=1 // pred_check
      _
    $region15: #{linear_forward.1} parent=1 // pred_check_branch
      %28 = sbr.rel (0) target = $region17
    $region16: #{linear_forward.1} parent=1 // pred_region
      %30 = dma.done [#allocation5], 128
    $region17: #{linear_forward.1} parent=1 // pred_fallthru
      _
    %s31 = sld [smem:[#allocation2]]
    %s32 = sld [smem:[#allocation3]]
    %v33 = vld [vmem:[#allocation4] sm:$0xff]
    %v34 = vstv %s31
    %v35 = vmul.f32 %v33, %v34
    %v36 = vstv %s32
    %v37 = vadd.f32 %v35, %v36
    %38 = vst [vmem:[#allocation7] sm:$0xff] %v37
    // Predicated region
    $region18: #{linear_forward.1} parent=1 // pred_check
      _
    $region19: #{linear_forward.1} parent=1 // pred_check_branch
      %40 = sbr.rel (0) target = $region21
    $region20: #{linear_forward.1} parent=1 // pred_region
      %42 = vsyncadd [#allocation6], 0
      %s44 = sshll.u32 [#allocation7], 4
      %s45 = int_to_ptr.vmem [resolvable:$true] %s44
      %s46 = sshll.u32 %s3, 4
      %s47 = int_to_ptr.hbm [resolvable:$true] %s46
      %49 = dma.vmem_to_hbm [thread:$0]  %s45, 128, %s47, [#allocation6]
    $region21: #{linear_forward.1} parent=1 // pred_fallthru
      _
    // Predicated region
    $region22: #{linear_forward.1} parent=1 // pred_check
      _
    $region23: #{linear_forward.1} parent=1 // pred_check_branch
      %51 = sbr.rel (0) target = $region25
    $region24: #{linear_forward.1} parent=1 // pred_region
      %53 = dma.done [#allocation6], 128
    $region25: #{linear_forward.1} parent=1 // pred_fallthru
      _
    %54 = vsyncpa [#allocation5], 1
    %55 = vsyncpa [#allocation6], 1

</llo_original>
